<compile_context>
chip_gen: v7x
topology: tpu7x:2x2x1
jax: 0.10.0
libtpu: 0.0.40
codegen_flags: <defaults>
</compile_context>

<pallas_src>
import math
from functools import partial

import jax
import jax.numpy as jnp
from jax.experimental import pallas as pl
from jax.experimental.pallas import tpu as pltpu


# ----------------------------- Pallas kernel ------------------------------ #
def _nconv_kernel(x_ref, waug_ref, wrow_ref, b_ref, o_ref, *,
                  n_filters, inv_k, eps):
    # x_ref:    (K, TL)  patch columns (bf16 by default)
    # waug_ref: (F+1, K) rows 0..F-1 = quantized W, row F = ones
    # wrow_ref: (F, 1)   f32 row-sums of the quantized W  (== W @ 1)
    # b_ref:    (F, 1)   f32 bias
    # o_ref:    (F, TL)  output tile (f32 by default)
    x = x_ref[...]                               # raw bf16 straight to the MXU
    waug = waug_ref[...]                         # (F+1, K)

    # One MXU call: rows 0..F-1 give W@x, row F (ones) gives per-column sums.
    p = jnp.dot(waug, x, preferred_element_type=jnp.float32)      # (F+1, TL)
    wx = p[:n_filters, :]                        # (F, TL)
    s = p[n_filters:, :]                         # (1, TL)

    # Sum of squares via the idle MXU (ones row of waug); x*x is the only
    # remaining full (K, TL) VPU pass.  The extra F rows are free filler.
    ss = jnp.dot(waug, x * x, preferred_element_type=jnp.float32)[n_filters:, :]

    # Per-column stats, single pass.  Padded all-zero tail columns (only when
    # L % 128 != 0) give var = 0 -> inv_std finite via eps -> y = bias, and
    # are sliced off by the caller.
    mean = s * inv_k                                               # (1, TL)
    var = jnp.maximum(ss * inv_k - mean * mean, 0.0)               # clamp fp
    inv_std = jax.lax.rsqrt(var + eps)                             # EUP slot

    # Folded normalization + bias: all O(F*TL) work; lane-dense full-width store.
    y = (wx - wrow_ref[...] * mean) * inv_std + b_ref[...]
    o_ref[...] = y.astype(o_ref.dtype)


def _choose_l_tile(L, N, tl_max=1024, min_steps=4):
    """Pick a lane-dense tile (multiple of 128) over the L axis.

    Preference order:
      (1) tl divides L  -> no jnp.pad HBM copy of the 9x patch stream,
      (2) N * num_L_tiles >= min_steps  -> >= 2 grid steps per TC on v7x,
      (3) tl as large as possible  -> amortize ~0.35us per-step overhead.
    """
    Lp128 = pl.cdiv(L, 128) * 128
    tl_cap = max(128, min(tl_max, Lp128) // 128 * 128)
    best = None
    for tl in range(tl_cap, 0, -128):
        Lp = pl.cdiv(L, tl) * tl
        nopad = (Lp == L)
        enough = N * (Lp // tl) >= min_steps
        key = (nopad, enough, tl)
        if best is None or key > best[0]:
            best = (key, tl, Lp)
    return best[1], best[2]


def _nconv_pallas(patches, w_flat, bias, *, eps=1e-14, tl_max=1024,
                  out_dtype=jnp.float32):
    """patches: (N, K, L) (bf16/f32); w_flat: (F, K); bias: (F,) -> (N, F, L)."""
    N, K, L = patches.shape
    F = w_flat.shape[0]

    tl, Lp = _choose_l_tile(L, N, tl_max)
    if Lp != L:
        # Only reached when L is not a multiple of 128.
        # TODO(synk): replace with a masked store of the ragged tail tile to
        # avoid this extra HBM copy of the dominant patch stream.
        patches = jnp.pad(patches, ((0, 0), (0, 0), (0, Lp - L)))

    # Quantize weights once to the patch dtype so the MXU runs its native
    # bf16 x bf16, f32-accumulate path; append a row of ones so a single
    # matmul also yields the per-column sums.
    w_q = w_flat.astype(jnp.float32).astype(patches.dtype)              # (F, K)
    w_aug = jnp.concatenate([w_q, jnp.ones((1, K), w_q.dtype)], axis=0)  # (F+1,K)
    # Row sums of the *quantized* W so (W @ 1) matches the in-kernel W exactly.
    w_rowsum = jnp.sum(w_q.astype(jnp.float32), axis=1, keepdims=True)   # (F, 1)
    bias2d = bias.reshape(F, 1).astype(jnp.float32)

    out = pl.pallas_call(
        partial(_nconv_kernel, n_filters=F, inv_k=1.0 / K, eps=eps),
        out_shape=jax.ShapeDtypeStruct((N, F, Lp), out_dtype),
        grid_spec=pltpu.PrefetchScalarGridSpec(
            num_scalar_prefetch=0,
            grid=(N, Lp // tl),
            in_specs=[
                pl.BlockSpec((None, K, tl), lambda n, l: (n, 0, l)),   # patches
                pl.BlockSpec((F + 1, K), lambda n, l: (0, 0)),         # [W; 1]
                pl.BlockSpec((F, 1), lambda n, l: (0, 0)),             # W @ 1
                pl.BlockSpec((F, 1), lambda n, l: (0, 0)),             # bias
            ],
            out_specs=pl.BlockSpec((None, F, tl), lambda n, l: (n, 0, l)),
        ),
        compiler_params=pltpu.CompilerParams(
            dimension_semantics=("parallel", "parallel")),
    )(patches, w_aug, w_rowsum, bias2d)

    return out if Lp == L else out[:, :, :L]


# ------------------------------- JAX glue ---------------------------------- #
def _unfold_nchw_klast(x, kernel_size, dilation, padding, stride,
                       dtype=jnp.float32):
    """F.unfold equivalent emitted directly in (N, K, L) order with PyTorch's
    K ordering (channel slowest, then kh, then kw).  No transpose of the
    unfolded (9x-sized) tensor is ever performed."""
    N, C, H, W = x.shape
    k, d, p, s = kernel_size, dilation, padding, stride
    oh = (H + 2 * p - d * (k - 1) - 1) // s + 1
    ow = (W + 2 * p - d * (k - 1) - 1) // s + 1

    xp = jnp.pad(x.astype(dtype), ((0, 0), (0, 0), (p, p), (p, p)))
    cols = []
    for i in range(k):
        for j in range(k):
            sl = xp[:, :, i * d: i * d + s * (oh - 1) + 1: s,
                          j * d: j * d + s * (ow - 1) + 1: s]  # (N, C, oh, ow)
            cols.append(sl)
    # stack -> (N, C, k*k, oh, ow); contiguous reshape -> (N, C*k*k, oh*ow)
    patches = jnp.stack(cols, axis=2).reshape(N, C * k * k, oh * ow)
    return patches, oh, ow


class NConvPallas:
    """Mirror of the PyTorch NCONV module (center=True, scale=True, bias=True
    path; the 'scale' nn.Parameter is unused in the reference forward)."""

    def __init__(self, kernel_size=3, dilation=1, padding=1, stride=1,
                 filters=8, channel=4, key=None, patch_dtype=jnp.bfloat16,
                 out_dtype=jnp.float32):
        self.kernel_size = kernel_size
        self.dilation = dilation
        self.padding = padding
        self.stride = stride
        self.filters = filters
        self.channel = channel
        self.patch_dtype = patch_dtype
        self.out_dtype = out_dtype

        key = jax.random.PRNGKey(0) if key is None else key
        kw, kb = jax.random.split(key)
        # kaiming_normal_(mode='fan_out'): std = sqrt(2 / (filters * k * k))
        fan_out = filters * kernel_size * kernel_size
        std = math.sqrt(2.0 / fan_out)
        self.weight = std * jax.random.normal(
            kw, (filters, channel, kernel_size, kernel_size), dtype=jnp.float32)
        self.bias = 0.1 * jax.random.normal(kb, (filters,), dtype=jnp.float32)

    def __call__(self, x):
        # x: (N, C, H, W) float32
        N = x.shape[0]
        patches, oh, ow = _unfold_nchw_klast(
            x, self.kernel_size, self.dilation, self.padding, self.stride,
            dtype=self.patch_dtype)                        # (N, K, L)
        w_flat = self.weight.reshape(self.filters, -1)     # (F, K)
        y = _nconv_pallas(patches, w_flat, self.bias,
                          out_dtype=self.out_dtype)        # (N, F, L)
        return y.reshape(N, self.filters, oh, ow)          # free reshape


# -------------------------------- main ------------------------------------- #
if __name__ == "__main__":
    key = jax.random.PRNGKey(0)
    kx, kp = jax.random.split(key)

    N, C, H, W = 2, 4, 16, 16
    FILTERS, KS = 8, 3
    x = jax.random.normal(kx, (N, C, H, W), dtype=jnp.float32)

    mod = NConvPallas(kernel_size=KS, dilation=1, padding=1, stride=1,
                      filters=FILTERS, channel=C, key=kp)

    out = mod(x)
    out = jax.block_until_ready(out)
    assert out.shape == (N, FILTERS, H, W), out.shape

    # --- references in plain JAX --------------------------------------------
    patches32, _, _ = _unfold_nchw_klast(x, KS, 1, 1, 1, dtype=jnp.float32)
    K = patches32.shape[1]
    inv_k = 1.0 / K
    w_flat32 = mod.weight.reshape(FILTERS, -1)

    def reference_f32(p):
        # PyTorch semantics: two-pass var, f32 weights/patches.
        mean = p.mean(axis=1, keepdims=True)
        xc = p - mean
        var = (xc * xc).mean(axis=1, keepdims=True)
        xn = xc / jnp.sqrt(var + 1e-14)
        y = jnp.einsum("fk,nkl->nfl", w_flat32, xn,
                       preferred_element_type=jnp.float32)
        y = y + mod.bias[None, :, None]
        return y.reshape(N, FILTERS, H, W)

    def reference_kernel_math(p):
        # Same quantization & folded algebra as the kernel (bf16 streams,
        # f32 accumulation, single-pass variance).
        xb = p.astype(jnp.bfloat16)
        wb = w_flat32.astype(jnp.bfloat16)
        s = jnp.sum(xb.astype(jnp.float32), axis=1, keepdims=True)
        ss = jnp.sum((xb * xb).astype(jnp.float32), axis=1, keepdims=True)
        mean = s * inv_k
        var = jnp.maximum(ss * inv_k - mean * mean, 0.0)
        inv_std = jax.lax.rsqrt(var + 1e-14)
        wx = jnp.einsum("fk,nkl->nfl", wb, xb,
                        preferred_element_type=jnp.float32)
        wrow = jnp.sum(wb.astype(jnp.float32), axis=1).reshape(1, FILTERS, 1)
        y = (wx - wrow * mean) * inv_std + mod.bias[None, :, None]
        return y.reshape(N, FILTERS, H, W)

    # (a) kernel-math check against a reference with matching quantization.
    ref_q = reference_kernel_math(patches32)
    assert jnp.allclose(out, ref_q, atol=5e-3, rtol=5e-3), (
        float(jnp.max(jnp.abs(out - ref_q))))

    # (b) end-to-end f32 semantics check (bf16 patch + weight streams => looser).
    ref_f32 = reference_f32(patches32)
    assert jnp.allclose(out, ref_f32, atol=4e-2, rtol=4e-2), (
        float(jnp.max(jnp.abs(out - ref_f32))))

    print("KERNEL_OK")
</pallas_src>

<mosaic_0001>
module attributes {stable_mosaic.version = 11 : i64} {
  func.func @_nconv_kernel(%arg0: i32, %arg1: i32, %arg2: memref<1x36x128xbf16, #tpu.memory_space<vmem>>, %arg3: memref<9x36xbf16, #tpu.memory_space<vmem>>, %arg4: memref<8x1xf32, #tpu.memory_space<vmem>>, %arg5: memref<8x1xf32, #tpu.memory_space<vmem>>, %arg6: memref<1x8x128xf32, #tpu.memory_space<vmem>>) attributes {dimension_semantics = [#tpu.dimension_semantics<parallel>, #tpu.dimension_semantics<parallel>], iteration_bounds = array<i64: 2, 2>, scalar_prefetch = 0 : i64, scratch_operands = 0 : i64, tpu.core_type = #tpu.core_type<tc>, window_params = [{transform_indices = @transform_0, window_bounds = array<i64: 1, 36, 128>}, {pipeline_mode = #tpu.pipeline_mode<synchronous>, transform_indices = @transform_1, window_bounds = array<i64: 9, 36>}, {pipeline_mode = #tpu.pipeline_mode<synchronous>, transform_indices = @transform_2, window_bounds = array<i64: 8, 1>}, {pipeline_mode = #tpu.pipeline_mode<synchronous>, transform_indices = @transform_3, window_bounds = array<i64: 8, 1>}, {transform_indices = @transform_4, window_bounds = array<i64: 1, 8, 128>}]} {
    %c0 = arith.constant 0 : index
    %c0_0 = arith.constant 0 : index
    %c0_1 = arith.constant 0 : index
    %0 = vector.load %arg2[%c0, %c0_0, %c0_1] : memref<1x36x128xbf16, #tpu.memory_space<vmem>>, vector<1x36x128xbf16>
    %1 = vector.shape_cast %0 : vector<1x36x128xbf16> to vector<36x128xbf16>
    %c0_2 = arith.constant 0 : index
    %c0_3 = arith.constant 0 : index
    %2 = vector.load %arg3[%c0_2, %c0_3] : memref<9x36xbf16, #tpu.memory_space<vmem>>, vector<9x36xbf16>
    %cst = arith.constant dense<0.000000e+00> : vector<9x128xf32>
    %3 = tpu.matmul %2, %1, %cst {dimension_numbers = #tpu.dot_dimension_numbers<[1], [0], [0], [1], [0, 0, 1, 1], [], []>} : vector<9x36xbf16>, vector<36x128xbf16>, vector<9x128xf32> -> vector<9x128xf32>
    %4 = vector.extract_strided_slice %3 {offsets = [0, 0], sizes = [8, 128], strides = [1, 1]} : vector<9x128xf32> to vector<8x128xf32>
    %5 = vector.extract_strided_slice %3 {offsets = [8, 0], sizes = [1, 128], strides = [1, 1]} : vector<9x128xf32> to vector<1x128xf32>
    %6 = arith.mulf %1, %1 : vector<36x128xbf16>
    %cst_4 = arith.constant dense<0.000000e+00> : vector<9x128xf32>
    %7 = tpu.matmul %2, %6, %cst_4 {dimension_numbers = #tpu.dot_dimension_numbers<[1], [0], [0], [1], [0, 0, 1, 1], [], []>} : vector<9x36xbf16>, vector<36x128xbf16>, vector<9x128xf32> -> vector<9x128xf32>
    %8 = vector.extract_strided_slice %7 {offsets = [8, 0], sizes = [1, 128], strides = [1, 1]} : vector<9x128xf32> to vector<1x128xf32>
    %cst_5 = arith.constant 0.027777778 : f32
    %9 = vector.broadcast %cst_5 : f32 to vector<1x128xf32>
    %10 = arith.mulf %5, %9 : vector<1x128xf32>
    %cst_6 = arith.constant 0.027777778 : f32
    %11 = vector.broadcast %cst_6 : f32 to vector<1x128xf32>
    %12 = arith.mulf %8, %11 : vector<1x128xf32>
    %13 = arith.mulf %10, %10 : vector<1x128xf32>
    %14 = arith.subf %12, %13 : vector<1x128xf32>
    %cst_7 = arith.constant 0.000000e+00 : f32
    %15 = vector.broadcast %cst_7 : f32 to vector<1x128xf32>
    %16 = arith.maximumf %14, %15 : vector<1x128xf32>
    %cst_8 = arith.constant 9.99999982E-15 : f32
    %17 = vector.broadcast %cst_8 : f32 to vector<1x128xf32>
    %18 = arith.addf %16, %17 : vector<1x128xf32>
    %19 = math.rsqrt %18 : vector<1x128xf32>
    %c0_9 = arith.constant 0 : index
    %c0_10 = arith.constant 0 : index
    %20 = vector.load %arg4[%c0_9, %c0_10] : memref<8x1xf32, #tpu.memory_space<vmem>>, vector<8x1xf32>
    %21 = vector.broadcast %20 : vector<8x1xf32> to vector<8x128xf32>
    %22 = vector.broadcast %10 : vector<1x128xf32> to vector<8x128xf32>
    %23 = arith.mulf %21, %22 : vector<8x128xf32>
    %24 = arith.subf %4, %23 : vector<8x128xf32>
    %25 = vector.broadcast %19 : vector<1x128xf32> to vector<8x128xf32>
    %26 = arith.mulf %24, %25 : vector<8x128xf32>
    %c0_11 = arith.constant 0 : index
    %c0_12 = arith.constant 0 : index
    %27 = vector.load %arg5[%c0_11, %c0_12] : memref<8x1xf32, #tpu.memory_space<vmem>>, vector<8x1xf32>
    %28 = vector.broadcast %27 : vector<8x1xf32> to vector<8x128xf32>
    %29 = arith.addf %26, %28 : vector<8x128xf32>
    %c0_13 = arith.constant 0 : index
    %c0_14 = arith.constant 0 : index
    %c0_15 = arith.constant 0 : index
    %30 = vector.load %arg6[%c0_13, %c0_14, %c0_15] : memref<1x8x128xf32, #tpu.memory_space<vmem>>, vector<1x8x128xf32>
    %31 = vector.shape_cast %30 : vector<1x8x128xf32> to vector<8x128xf32>
    %32 = vector.shape_cast %29 : vector<8x128xf32> to vector<1x8x128xf32>
    tpu.vector_store %arg6[%c0_13, %c0_14, %c0_15], %32 {strides = array<i32>} : memref<1x8x128xf32, #tpu.memory_space<vmem>>, vector<1x8x128xf32>,
    return
  }
  func.func @transform_0(%arg0: i32, %arg1: i32) -> (i32, i32, i32) {
    %c0_i32 = arith.constant 0 : i32
    %c0_i32_0 = arith.constant 0 : i32
    return %arg0, %c0_i32, %arg1 : i32, i32, i32
  }
  func.func @transform_1(%arg0: i32, %arg1: i32) -> (i32, i32) {
    %c0_i32 = arith.constant 0 : i32
    %c0_i32_0 = arith.constant 0 : i32
    %c0_i32_1 = arith.constant 0 : i32
    return %c0_i32, %c0_i32_0 : i32, i32
  }
  func.func @transform_2(%arg0: i32, %arg1: i32) -> (i32, i32) {
    %c0_i32 = arith.constant 0 : i32
    %c0_i32_0 = arith.constant 0 : i32
    %c0_i32_1 = arith.constant 0 : i32
    return %c0_i32, %c0_i32_0 : i32, i32
  }
  func.func @transform_3(%arg0: i32, %arg1: i32) -> (i32, i32) {
    %c0_i32 = arith.constant 0 : i32
    %c0_i32_0 = arith.constant 0 : i32
    %c0_i32_1 = arith.constant 0 : i32
    return %c0_i32, %c0_i32_0 : i32, i32
  }
  func.func @transform_4(%arg0: i32, %arg1: i32) -> (i32, i32, i32) {
    %c0_i32 = arith.constant 0 : i32
    %c0_i32_0 = arith.constant 0 : i32
    return %arg0, %c0_i32, %arg1 : i32, i32, i32
  }
}

</mosaic_0001>

<llo_original>
// kernel: tpu_custom_call.1
$region0: #{tpu_custom_call.1}
  #allocation0 [shape = 'u32[]', space=smem, size = 0x4, offset = 0x4, fixed_abs, tag = 'smem constant byte address 0x4 - core index']
  #allocation1 [shape = 'u32[144,128]{1,0:T(1,128)}', space=vmem, size = 0x12000, scoped, tag = 'internal scratch']
  %s0 = inlined_call_operand.vmem [shape: bf16[2,36,256], index: 0, kind: input, shape index: {}]
  %s1 = inlined_call_operand.vmem [shape: bf16[9,36], index: 1, kind: input, shape index: {}]
  %s2 = inlined_call_operand.vmem [shape: f32[8,1], index: 2, kind: input, shape index: {}]
  %s3 = inlined_call_operand.vmem [shape: f32[8,1], index: 3, kind: input, shape index: {}]
  %s4 = inlined_call_operand.hbm [shape: f32[2,8,256], index: 4, kind: output, shape index: {}]
  %s5 = sld [smem:[#allocation0]]
  $region90: #{tpu_custom_call.1} parent=0
    _
  %s7 = ssub.s32 1, %s5
  %s8 = scalar_select 0, %s7, %s5
  $region1: #{tpu_custom_call.1} parent=0
    #allocation2 [shape = 'u8[20480]{0}', space=vmem, size = 0x5000, scoped, tag = 'input window, operand 0']
    #allocation3 [shape = 'u8[8192]{0}', space=vmem, size = 0x2000, scoped, tag = 'output window, operand 0']
    #allocation4 [shape = 's32[2]{0}', space=sflag, size = 0x8, scoped, tag = 'scoped memory for tpu_custom_call.1']
    %9 = vsyncpa [#allocation4], 0
    %s10 = scalar_lea.sflag [#allocation4], 1
    %11 = vsyncpa %s10, 0
    loop: start=0, step=1, limit=6
    $region2: #{tpu_custom_call.1} parent=1 // loop_pre_header
      _
    $region3: #{tpu_custom_call.1} parent=1 // loop_header
      %s13 = sphi 0, %s17
      %p14 = scmp.ge.s32.totalorder %s13, 6
      %s20 = sphi 0, %s32
      %s21 = sphi 0, %s28
      %s22 = sphi 0, %s20
      %s23 = sphi 0, %s21
      %s24 = sphi 0, %s22
      %s25 = sphi 0, %s23
      %s37 = sphi 0, %s39
      %s40 = sphi 0, %s37
      %s41 = sphi 0, %s40
      %s57 = sphi 0, %s41
      %s61 = sphi 0, %s61
      %s63 = sphi 0, %s61
      %s64 = sphi 0, %s63
      %s78 = sphi 0, %s64
      %s82 = sphi 0, %s82
      %s84 = sphi 0, %s82
      %s85 = sphi 0, %s84
      %s99 = sphi 0, %s85
      %s103 = sphi 0, %s103
      %s105 = sphi 0, %s103
      %s106 = sphi 0, %s105
      %s120 = sphi 0, %s106
      %s128 = sphi 0, %s130
      %s131 = sphi 0, %s128
      %s132 = sphi 0, %s131
      %s148 = sphi 0, %s132
    $region4: #{tpu_custom_call.1} parent=1 // loop_header_branch
      %16 = sbr.rel (%p14) target = $region8
    $region5: #{tpu_custom_call.1} parent=1 // loop_body
      %s18 = ssub.s32 %s13, 1
      %s19 = ssub.s32 %s13, 2
      %s26 = sadd.s32 1, %s21
      %p27 = scmp.ge.s32.totalorder %s26, 2
      %s28 = scalar_select %p27, 0, %s26
      %s29 = sadd.s32 1, %s20
      %s30 = scalar_select %p27, %s29, %s20
      %p31 = scmp.ge.s32.totalorder %s30, 2
      %s32 = scalar_select %p31, 0, %s30
      %s33 = ssub.s32 %s20, %s32
      %s34 = ssub.s32 %s21, %s28
      %s35 = sor.u32 %s33, %s34
      %p36 = scmp.eq.s32.totalorder %s35, 0
      %s38 = sadd.s32 %s37, 1
      %s39 = scalar_select %p36, %s37, %s38
      %p42 = pneg %p36
      %p43 = scmp.eq.s32.totalorder %s13, 3
      %p44 = por %p42, %p43
      %p45 = scmp.ne.s32.totalorder %s37, %s40
      %p46 = scmp.eq.s32.totalorder %s13, 0
      %p47 = por %p45, %p46
      %p48 = scmp.ne.s32.totalorder %s37, %s40
      %p49 = scmp.eq.s32.totalorder %s18, 3
      %p50 = por %p48, %p49
      %p51 = scmp.ne.s32.totalorder %s40, %s41
      %p52 = scmp.eq.s32.totalorder %s18, 0
      %p53 = por %p51, %p52
      %p54 = scmp.ne.s32.totalorder %s40, %s41
      %p55 = scmp.eq.s32.totalorder %s19, 3
      %p56 = por %p54, %p55
      %p58 = scmp.ne.s32.totalorder %s41, %s57
      %p59 = scmp.eq.s32.totalorder %s19, 0
      %p60 = por %p58, %p59
      %s62 = sadd.s32 %s61, 1
      %p65 = scmp.eq.s32.totalorder %s13, 3
      %p66 = scmp.ne.s32.totalorder %s61, %s63
      %p67 = scmp.eq.s32.totalorder %s13, 0
      %p68 = por %p66, %p67
      %p69 = scmp.ne.s32.totalorder %s61, %s63
      %p70 = scmp.eq.s32.totalorder %s18, 3
      %p71 = por %p69, %p70
      %p72 = scmp.ne.s32.totalorder %s63, %s64
      %p73 = scmp.eq.s32.totalorder %s18, 0
      %p74 = por %p72, %p73
      %p75 = scmp.ne.s32.totalorder %s63, %s64
      %p76 = scmp.eq.s32.totalorder %s19, 3
      %p77 = por %p75, %p76
      %p79 = scmp.ne.s32.totalorder %s64, %s78
      %p80 = scmp.eq.s32.totalorder %s19, 0
      %p81 = por %p79, %p80
      %s83 = sadd.s32 %s82, 1
      %p86 = scmp.eq.s32.totalorder %s13, 3
      %p87 = scmp.ne.s32.totalorder %s82, %s84
      %p88 = scmp.eq.s32.totalorder %s13, 0
      %p89 = por %p87, %p88
      %p90 = scmp.ne.s32.totalorder %s82, %s84
      %p91 = scmp.eq.s32.totalorder %s18, 3
      %p92 = por %p90, %p91
      %p93 = scmp.ne.s32.totalorder %s84, %s85
      %p94 = scmp.eq.s32.totalorder %s18, 0
      %p95 = por %p93, %p94
      %p96 = scmp.ne.s32.totalorder %s84, %s85
      %p97 = scmp.eq.s32.totalorder %s19, 3
      %p98 = por %p96, %p97
      %p100 = scmp.ne.s32.totalorder %s85, %s99
      %p101 = scmp.eq.s32.totalorder %s19, 0
      %p102 = por %p100, %p101
      %s104 = sadd.s32 %s103, 1
      %p107 = scmp.eq.s32.totalorder %s13, 3
      %p108 = scmp.ne.s32.totalorder %s103, %s105
      %p109 = scmp.eq.s32.totalorder %s13, 0
      %p110 = por %p108, %p109
      %p111 = scmp.ne.s32.totalorder %s103, %s105
      %p112 = scmp.eq.s32.totalorder %s18, 3
      %p113 = por %p111, %p112
      %p114 = scmp.ne.s32.totalorder %s105, %s106
      %p115 = scmp.eq.s32.totalorder %s18, 0
      %p116 = por %p114, %p115
      %p117 = scmp.ne.s32.totalorder %s105, %s106
      %p118 = scmp.eq.s32.totalorder %s19, 3
      %p119 = por %p117, %p118
      %p121 = scmp.ne.s32.totalorder %s106, %s120
      %p122 = scmp.eq.s32.totalorder %s19, 0
      %p123 = por %p121, %p122
      %s124 = ssub.s32 %s20, %s32
      %s125 = ssub.s32 %s21, %s28
      %s126 = sor.u32 %s124, %s125
      %p127 = scmp.eq.s32.totalorder %s126, 0
      %s129 = sadd.s32 %s128, 1
      %s130 = scalar_select %p127, %s128, %s129
      %p133 = pneg %p127
      %p134 = scmp.eq.s32.totalorder %s13, 3
      %p135 = por %p133, %p134
      %p136 = scmp.ne.s32.totalorder %s128, %s131
      %p137 = scmp.eq.s32.totalorder %s13, 0
      %p138 = por %p136, %p137
      %p139 = scmp.ne.s32.totalorder %s128, %s131
      %p140 = scmp.eq.s32.totalorder %s18, 3
      %p141 = por %p139, %p140
      %p142 = scmp.ne.s32.totalorder %s131, %s132
      %p143 = scmp.eq.s32.totalorder %s18, 0
      %p144 = por %p142, %p143
      %p145 = scmp.ne.s32.totalorder %s131, %s132
      %p146 = scmp.eq.s32.totalorder %s19, 3
      %p147 = por %p145, %p146
      %p149 = scmp.ne.s32.totalorder %s132, %s148
      %p150 = scmp.eq.s32.totalorder %s19, 0
      %p151 = por %p149, %p150
      %p152 = scmp.le.s32.totalorder 1, %s13
      %p153 = scmp.lt.s32.totalorder %s13, 5
      %p154 = pnand %p152, %p153
      %p155 = pneg %p154
      // Predicated region
      $region9: #{tpu_custom_call.1} parent=5 // pred_check
        _
      $region10: #{tpu_custom_call.1} parent=5 // pred_check_branch
        %157 = sbr.rel (%p154) target = $region12
      $region11: #{tpu_custom_call.1} parent=5 // pred_region
        %s158 = ssub.s32 %s13, 1
        // Predicated region
        $region13: #{tpu_custom_call.1} parent=11 // pred_check
          %p159 = pneg %p74
        $region14: #{tpu_custom_call.1} parent=11 // pred_check_branch
          %161 = sbr.rel (%p159) target = $region16
        $region15: #{tpu_custom_call.1} parent=11 // pred_region
          _
        $region16: #{tpu_custom_call.1} parent=11 // pred_fallthru
          _
        // Predicated region
        $region17: #{tpu_custom_call.1} parent=11 // pred_check
          %p162 = pneg %p95
        $region18: #{tpu_custom_call.1} parent=11 // pred_check_branch
          %164 = sbr.rel (%p162) target = $region20
        $region19: #{tpu_custom_call.1} parent=11 // pred_region
          _
        $region20: #{tpu_custom_call.1} parent=11 // pred_fallthru
          _
        // Predicated region
        $region21: #{tpu_custom_call.1} parent=11 // pred_check
          %p165 = pneg %p116
        $region22: #{tpu_custom_call.1} parent=11 // pred_check_branch
          %167 = sbr.rel (%p165) target = $region24
        $region23: #{tpu_custom_call.1} parent=11 // pred_region
          _
        $region24: #{tpu_custom_call.1} parent=11 // pred_fallthru
          _
      $region12: #{tpu_custom_call.1} parent=5 // pred_fallthru
        _
      %p168 = scmp.lt.s32.totalorder %s13, 4
      // Predicated region
      $region25: #{tpu_custom_call.1} parent=5 // pred_check
        %p169 = pneg %p168
      $region26: #{tpu_custom_call.1} parent=5 // pred_check_branch
        %171 = sbr.rel (%p169) target = $region28
      $region27: #{tpu_custom_call.1} parent=5 // pred_region
        // Predicated region
        $region29: #{tpu_custom_call.1} parent=27 // pred_check
          %p172 = pneg %p47
        $region30: #{tpu_custom_call.1} parent=27 // pred_check_branch
          %174 = sbr.rel (%p172) target = $region32
        $region31: #{tpu_custom_call.1} parent=27 // pred_region
          %s175 = sand.u32 %s37, 1
          %s176 = sand.u32 %s37, 1
          %s177 = smul.addr %s176, 20
          %s178 = scalar_lea.vmem [#allocation2], %s177
          %s179 = smul.addr %s20, 10
          %s180 = sadd.s32 %s21, %s179
          %s181 = smul.addr %s180, 4
          %s182 = scalar_lea.vmem %s0, %s181
          // Predicated region
          $region33: #{tpu_custom_call.1} parent=31 // pred_check
            _
          $region34: #{tpu_custom_call.1} parent=31 // pred_check_branch
            %184 = sbr.rel (0) target = $region36
          $region35: #{tpu_custom_call.1} parent=31 // pred_region
            // Predicated region
            $region37: #{tpu_custom_call.1} parent=35 // pred_check
              _
            $region38: #{tpu_custom_call.1} parent=35 // pred_check_branch
              %186 = sbr.rel target = $region40
            $region39: #{tpu_custom_call.1} parent=35 // pred_region
              // Predicated region
              $region52: #{tpu_custom_call.1} parent=39 // pred_check
                _
              $region53: #{tpu_custom_call.1} parent=39 // pred_check_branch
                %209 = sbr.rel (0) target = $region55
              $region54: #{tpu_custom_call.1} parent=39 // pred_region
                loop: start=0, step=1, limit=1
                $region56: #{tpu_custom_call.1} parent=54 // loop_pre_header
                  _
                $region57: #{tpu_custom_call.1} parent=54 // loop_header
                  %s211 = sphi 0, %s215
                  %p212 = scmp.ge.s32.totalorder %s211, 1
                  %s216 = sphi %s182, %s182
                  %s217 = sphi %s178, %s178
                $region58: #{tpu_custom_call.1} parent=54 // loop_header_branch
                  %214 = sbr.rel (%p212) target = $region62
                $region59: #{tpu_custom_call.1} parent=54 // loop_body
                  _
                $region60: #{tpu_custom_call.1} parent=54 // loop_footer
                  %s215 = sadd.s32 1, %s211
                $region61: #{tpu_custom_call.1} parent=54 // loop_footer_branch
                  %210 = sbr.rel target = $region57
                $region62: #{tpu_custom_call.1} parent=54 // loop_exit
                  _
                loop: start=0, step=1, limit=1
                $region63: #{tpu_custom_call.1} parent=54 // loop_pre_header
                  _
                $region64: #{tpu_custom_call.1} parent=54 // loop_header
                  %s220 = sphi 0, %s224
                  %p221 = scmp.ge.s32.totalorder %s220, 1
                  %s225 = sphi %s182, %s182
                  %s226 = sphi %s178, %s178
                $region65: #{tpu_custom_call.1} parent=54 // loop_header_branch
                  %223 = sbr.rel (%p221) target = $region69
                $region66: #{tpu_custom_call.1} parent=54 // loop_body
                  %v227 = vld [vmem:[%s225] sm:$0xf]
                  %228 = vst [vmem:[%s226] sm:$0xf] %v227
                  %v229 = vld [vmem:[%s225 + $0x8] sm:$0xf]
                  %230 = vst [vmem:[%s226 + $0x4] sm:$0xf] %v229
                  %v231 = vld [vmem:[%s225 + $0x10] sm:$0xf]
                  %232 = vst [vmem:[%s226 + $0x8] sm:$0xf] %v231
                  %v233 = vld [vmem:[%s225 + $0x18] sm:$0xf]
                  %234 = vst [vmem:[%s226 + $0xc] sm:$0xf] %v233
                  %v235 = vld [vmem:[%s225 + $0x20] sm:$0xf]
                  %236 = vst [vmem:[%s226 + $0x10] sm:$0xf] %v235
                $region67: #{tpu_custom_call.1} parent=54 // loop_footer
                  %s224 = sadd.s32 1, %s220
                $region68: #{tpu_custom_call.1} parent=54 // loop_footer_branch
                  %219 = sbr.rel target = $region64
                $region69: #{tpu_custom_call.1} parent=54 // loop_exit
                  _
              $region55: #{tpu_custom_call.1} parent=39 // pred_fallthru
                _
            $region40: #{tpu_custom_call.1} parent=35 // pred_fallthru
              _
            // Predicated region
            $region41: #{tpu_custom_call.1} parent=35 // pred_check
              _
            $region42: #{tpu_custom_call.1} parent=35 // pred_check_branch
              %188 = sbr.rel (0) target = $region44
            $region43: #{tpu_custom_call.1} parent=35 // pred_region
              loop: start=0, step=1, limit=1
              $region45: #{tpu_custom_call.1} parent=43 // loop_pre_header
                _
              $region46: #{tpu_custom_call.1} parent=43 // loop_header
                %s191 = sphi 0, %s195
                %p192 = scmp.ge.s32.totalorder %s191, 1
                %s196 = sphi %s182, %s182
                %s197 = sphi %s178, %s178
              $region47: #{tpu_custom_call.1} parent=43 // loop_header_branch
                %194 = sbr.rel (%p192) target = $region51
              $region48: #{tpu_custom_call.1} parent=43 // loop_body
                %v198 = vld [vmem:[%s196] sm:$0xf]
                %199 = vst [vmem:[%s197] sm:$0xf] %v198
                %v200 = vld [vmem:[%s196 + $0x8] sm:$0xf]
                %201 = vst [vmem:[%s197 + $0x4] sm:$0xf] %v200
                %v202 = vld [vmem:[%s196 + $0x10] sm:$0xf]
                %203 = vst [vmem:[%s197 + $0x8] sm:$0xf] %v202
                %v204 = vld [vmem:[%s196 + $0x18] sm:$0xf]
                %205 = vst [vmem:[%s197 + $0xc] sm:$0xf] %v204
                %v206 = vld [vmem:[%s196 + $0x20] sm:$0xf]
                %207 = vst [vmem:[%s197 + $0x10] sm:$0xf] %v206
              $region49: #{tpu_custom_call.1} parent=43 // loop_footer
                %s195 = sadd.s32 1, %s191
              $region50: #{tpu_custom_call.1} parent=43 // loop_footer_branch
                %190 = sbr.rel target = $region46
              $region51: #{tpu_custom_call.1} parent=43 // loop_exit
                _
            $region44: #{tpu_custom_call.1} parent=35 // pred_fallthru
              _
          $region36: #{tpu_custom_call.1} parent=31 // pred_fallthru
            _
          %237 = vnop
        $region32: #{tpu_custom_call.1} parent=27 // pred_fallthru
          _
      $region28: #{tpu_custom_call.1} parent=5 // pred_fallthru
        _
      %p238 = scmp.le.s32.totalorder 1, %s13
      %p239 = scmp.lt.s32.totalorder %s13, 5
      %p240 = pnand %p238, %p239
      %p241 = pneg %p240
      // Predicated region
      $region70: #{tpu_custom_call.1} parent=5 // pred_check
        _
      $region71: #{tpu_custom_call.1} parent=5 // pred_check_branch
        %243 = sbr.rel (%p240) target = $region73
      $region72: #{tpu_custom_call.1} parent=5 // pred_region
        %s244 = ssub.s32 %s13, 1
        %s245 = sand.u32 %s40, 1
        %s246 = sand.u32 %s40, 1
        %s247 = smul.addr %s246, 20
        %s248 = scalar_lea.vmem [#allocation2], %s247
        // Predicated region
        $region74: #{tpu_custom_call.1} parent=72 // pred_check
          %p249 = pneg %p53
        $region75: #{tpu_custom_call.1} parent=72 // pred_check_branch
          %251 = sbr.rel (%p249) target = $region77
        $region76: #{tpu_custom_call.1} parent=72 // pred_region
          _
        $region77: #{tpu_custom_call.1} parent=72 // pred_fallthru
          _
        %s252 = sand.u32 %s40, 1
        %s253 = sand.u32 %s40, 1
        %s254 = smul.addr %s253, 20
        %s255 = scalar_lea.vmem [#allocation2], %s254
        %p256 = pneg %p53
        %p257 = pneg %p50
        %p258 = pneg %p74
        %p259 = pneg %p71
        %p260 = pneg %p95
        %p261 = pneg %p92
        %p262 = pneg %p116
        %p263 = pneg %p113
        %p264 = pneg %p144
        %p265 = pneg %p141
        %s266 = sand.u32 %s131, 1
        %s267 = scalar_lea.sflag [#allocation4], %s266
        %s268 = sand.u32 %s131, 1
        %s269 = smul.addr %s268, 8
        %s270 = scalar_lea.vmem [#allocation3], %s269
        %v272 = vld [vmem:[%s248] sm:$0xf]
        %v273 = vld [vmem:[%s248 + $0x4] sm:$0xf]
        %v274 = vld [vmem:[%s248 + $0x8] sm:$0xf]
        %v275 = vld [vmem:[%s248 + $0xc] sm:$0xf]
        %v276 = vld [vmem:[%s248 + $0x10] sm:$0x3]
        %v277 = vld [vmem:[%s1] sm:$0xf]
        %v278 = vld [vmem:[%s1 + $0x4] sm:$0x1]
        %v281 = vunpack.c.l.b16 %v277
        %v282 = vunpack.c.l.b16 %v278
        %v283 = vpack.c.b16 %v282, %v281
        %v289 = vunpack.c.l.b16 %v272
        %v290 = vunpack.c.l.b16 %v273
        %v291 = vunpack.c.l.b16 %v274
        %v292 = vunpack.c.l.b16 %v275
        %v293 = vunpack.c.l.b16 %v276
        %v294 = vpack.c.b16 %v290, %v289
        %v295 = vpack.c.b16 %v292, %v291
        %v296 = vpack.c.b16 %v293, %v293
        %vm299 = vcmask 293888
        %v301 = vsel %vm299, %v283, 0
        %vm303 = vcmask 1041408
        %v305 = vsel %vm303, %v296, 0
        %307 = vmatprep.subr.bf16.mxu0 0
        %308 = vmatpush1.bf16.msra.mxu0 %v294
        %309 = vmatprep.subr.bf16.mxu0 0
        %310 = vmatpush1.bf16.msra.mxu0 %v295
        %311 = vmatprep.subr.bf16.mxu0 0
        %312 = vmatpush1.bf16.msra.mxu0 %v305
        %313 = vmatprep.subr.bf16.mxu0 0
        %314 = vmatpush1.bf16.msra.mxu0 0
        %315 = vmatprep.subr.bf16.mxu0 0
        %316 = vmatpush1.bf16.msra.mxu0 0
        %317 = vmatprep.subr.bf16.mxu0 0
        %318 = vmatpush1.bf16.msra.mxu0 0
        %319 = vmatprep.subr.bf16.mxu0 0
        %320 = vmatpush1.bf16.msra.mxu0 0
        %321 = vmatprep.subr.bf16.mxu0 0
        %322 = vmatpush1.bf16.msra.mxu0 0
        %323 = vmatprep.subr.bf16.mxu0 0
        %324 = vmatpush1.bf16.msra.mxu0 0
        %325 = vmatprep.subr.bf16.mxu0 0
        %326 = vmatpush1.bf16.msra.mxu0 0
        %327 = vmatprep.subr.bf16.mxu0 0
        %328 = vmatpush1.bf16.msra.mxu0 0
        %329 = vmatprep.subr.bf16.mxu0 0
        %330 = vmatpush1.bf16.msra.mxu0 0
        %331 = vmatprep.subr.bf16.mxu0 0
        %332 = vmatpush1.bf16.msra.mxu0 0
        %333 = vmatprep.subr.bf16.mxu0 0
        %334 = vmatpush1.bf16.msra.mxu0 0
        %335 = vmatprep.subr.bf16.mxu0 0
        %336 = vmatpush1.bf16.msra.mxu0 0
        %337 = vmatprep.subr.bf16.mxu0 0
        %338 = vmatpush1.bf16.msra.mxu0 0
        %339 = vmatprep.mubr.bf16.mxu0 0
        %340 = vmatmul.mubr.bf16.gmra.mrb[0].mxu0 %v301
        %v341 = vpop.f32.mrb[0].mxu0
        %v342 = vadd.f32 0.0, %v341
        %v343 = vpop.f32.mrb[0].mxu0
        %v344 = vpop.f32.mrb[0].mxu0
        %v345 = vadd.f32 0.0, %v344
        %v346 = vpop.f32.mrb[0].mxu0
        %347 = vdwg.mxu0
        %v348 = vmul.bf16 %v272, %v272
        %v349 = vmul.bf16 %v273, %v273
        %v350 = vmul.bf16 %v274, %v274
        %v351 = vmul.bf16 %v275, %v275
        %v352 = vmul.bf16 %v276, %v276
        %v358 = vunpack.c.l.b16 %v348
        %v359 = vunpack.c.l.b16 %v349
        %v360 = vunpack.c.l.b16 %v350
        %v361 = vunpack.c.l.b16 %v351
        %v362 = vunpack.c.l.b16 %v352
        %v363 = vpack.c.b16 %v359, %v358
        %v364 = vpack.c.b16 %v361, %v360
        %v365 = vpack.c.b16 %v362, %v362
        %v369 = vsel %vm303, %v365, 0
        %371 = vmatprep.subr.bf16.mxu0 0
        %372 = vmatpush1.bf16.msra.mxu0 %v363
        %373 = vmatprep.subr.bf16.mxu0 0
        %374 = vmatpush1.bf16.msra.mxu0 %v364
        %375 = vmatprep.subr.bf16.mxu0 0
        %376 = vmatpush1.bf16.msra.mxu0 %v369
        %377 = vmatprep.subr.bf16.mxu0 0
        %378 = vmatpush1.bf16.msra.mxu0 0
        %379 = vmatprep.subr.bf16.mxu0 0
        %380 = vmatpush1.bf16.msra.mxu0 0
        %381 = vmatprep.subr.bf16.mxu0 0
        %382 = vmatpush1.bf16.msra.mxu0 0
        %383 = vmatprep.subr.bf16.mxu0 0
        %384 = vmatpush1.bf16.msra.mxu0 0
        %385 = vmatprep.subr.bf16.mxu0 0
        %386 = vmatpush1.bf16.msra.mxu0 0
        %387 = vmatprep.subr.bf16.mxu0 0
        %388 = vmatpush1.bf16.msra.mxu0 0
        %389 = vmatprep.subr.bf16.mxu0 0
        %390 = vmatpush1.bf16.msra.mxu0 0
        %391 = vmatprep.subr.bf16.mxu0 0
        %392 = vmatpush1.bf16.msra.mxu0 0
        %393 = vmatprep.subr.bf16.mxu0 0
        %394 = vmatpush1.bf16.msra.mxu0 0
        %395 = vmatprep.subr.bf16.mxu0 0
        %396 = vmatpush1.bf16.msra.mxu0 0
        %397 = vmatprep.subr.bf16.mxu0 0
        %398 = vmatpush1.bf16.msra.mxu0 0
        %399 = vmatprep.subr.bf16.mxu0 0
        %400 = vmatpush1.bf16.msra.mxu0 0
        %401 = vmatprep.subr.bf16.mxu0 0
        %402 = vmatpush1.bf16.msra.mxu0 0
        %403 = vmatprep.mubr.bf16.mxu0 0
        %404 = vmatmul.mubr.bf16.gmra.mrb[0].mxu0 %v301
        %v405 = vpop.f32.mrb[0].mxu0
        %v406 = vpop.f32.mrb[0].mxu0
        %v407 = vpop.f32.mrb[0].mxu0
        %v408 = vadd.f32 0.0, %v407
        %v409 = vpop.f32.mrb[0].mxu0
        %410 = vdwg.mxu0
        %v411 = vmul.f32 %v345, 0.027777778
        %v412 = vmul.f32 %v408, 0.027777778
        %v413 = vmul.f32 %v411, %v411
        %v414 = vsub.f32 %v412, %v413
        %v415 = vmax.f32 %v414, 0.0
        %v416 = vadd.f32 %v415, 1e-14
        %v417 = vrsqrt.pop %v416
        %v418 = vld [vmem:[%s2] sm:$0xff]
        %420 = vset.pattern.permute.xlu0 0
        %421 = vperm.xlu0 %420, %v418
        %v422 = vpop.permute.xlu0 %421
        %v424 = vlaneseq
        %v425 = vshrl.u32 %v424, 7
        %v426 = vsub.s32 0, %v425
        %v427 = vrot.slane %v411, %v426
        %v428 = vmul.f32 %v422, %v427
        %v429 = vsub.f32 %v342, %v428
        %v430 = vlaneseq
        %v431 = vshrl.u32 %v430, 7
        %v432 = vsub.s32 0, %v431
        %v433 = vrot.slane %v417, %v432
        %v434 = vmul.f32 %v429, %v433
        %v435 = vld [vmem:[%s3] sm:$0xff]
        %437 = vset.pattern.permute.xlu0 0
        %438 = vperm.xlu0 %437, %v435
        %v439 = vpop.permute.xlu0 %438
        %v441 = vadd.f32 %v434, %v439
        %442 = vst [vmem:[%s270] sm:$0xff] %v441
        %s443 = sand.u32 %s131, 1
        %s444 = scalar_lea.sflag [#allocation4], %s443
        %s445 = sand.u32 %s131, 1
        %s446 = smul.addr %s445, 8
        %s447 = scalar_lea.vmem [#allocation3], %s446
        // Predicated region
        $region78: #{tpu_custom_call.1} parent=72 // pred_check
          %p448 = pneg %p141
        $region79: #{tpu_custom_call.1} parent=72 // pred_check_branch
          %450 = sbr.rel (%p448) target = $region81
        $region80: #{tpu_custom_call.1} parent=72 // pred_region
          %s452 = ssub.s32 128, 128
          %453 = vsyncadd %s444, %s452
          %s454 = smul.addr %s22, 2
          %s455 = sadd.s32 %s23, %s454
          %s456 = smul.addr %s455, 128
          %s457 = scalar_lea.hbm %s4, %s456
          %s459 = sshll.u32 %s447, 4
          %s460 = int_to_ptr.vmem [resolvable:$true] %s459
          %462 = dma.vmem_to_hbm [thread:$0]  %s460, 128, %s457, %s444
        $region81: #{tpu_custom_call.1} parent=72 // pred_fallthru
          _
      $region73: #{tpu_custom_call.1} parent=5 // pred_fallthru
        _
      %p463 = scmp.le.s32.totalorder 2, %s13
      // Predicated region
      $region82: #{tpu_custom_call.1} parent=5 // pred_check
        %p464 = pneg %p463
      $region83: #{tpu_custom_call.1} parent=5 // pred_check_branch
        %466 = sbr.rel (%p464) target = $region85
      $region84: #{tpu_custom_call.1} parent=5 // pred_region
        %s467 = ssub.s32 %s13, 2
        // Predicated region
        $region86: #{tpu_custom_call.1} parent=84 // pred_check
          %p468 = pneg %p147
        $region87: #{tpu_custom_call.1} parent=84 // pred_check_branch
          %470 = sbr.rel (%p468) target = $region89
        $region88: #{tpu_custom_call.1} parent=84 // pred_region
          %s471 = sand.u32 %s132, 1
          %s472 = scalar_lea.sflag [#allocation4], %s471
          %s473 = sand.u32 %s132, 1
          %s474 = smul.addr %s473, 8
          %s475 = scalar_lea.vmem [#allocation3], %s474
          %476 = dma.done %s472, 128
        $region89: #{tpu_custom_call.1} parent=84 // pred_fallthru
          _
      $region85: #{tpu_custom_call.1} parent=5 // pred_fallthru
        _
    $region6: #{tpu_custom_call.1} parent=1 // loop_footer
      %s17 = sadd.s32 1, %s13
    $region7: #{tpu_custom_call.1} parent=1 // loop_footer_branch
      %12 = sbr.rel target = $region3
    $region8: #{tpu_custom_call.1} parent=1 // loop_exit
      _
    %477 = vsyncpa [#allocation4], 1
    %s478 = scalar_lea.sflag [#allocation4], 1
    %479 = vsyncpa %s478, 1

</llo_original>
